<compile_context>
chip_gen: v7x
topology: tpu7x:2x2x1
jax: 0.10.0
libtpu: 0.0.40
codegen_flags: <defaults>
</compile_context>

<pallas_src>
import functools

import jax
import jax.numpy as jnp
from jax import lax
from jax.experimental import pallas as pl
from jax.experimental.pallas import tpu as pltpu

_MIB = 1024 * 1024


def _round_up(x: int, m: int) -> int:
    return ((x + m - 1) // m) * m


def _vmem_limit_bytes() -> int:
    """Generation-aware scoped VMEM limit."""
    try:
        phys = pltpu.get_tpu_info().vmem_capacity_bytes
    except Exception:
        phys = 64 * _MIB              # unknown -> assume smallest (v7x per-TC)
    if phys <= 64 * _MIB:             # v7x: 64 MiB physical per TensorCore
        return 32 * _MIB
    return 48 * _MIB                  # v5e / v6e: 128 MiB physical


# ---------------------------------------------------------------------------
# Single-pass kernel: whole hw row per block, softmax along lanes.
# ---------------------------------------------------------------------------
def _softmax_rows_kernel(x_ref, o_ref, *, f32_math: bool):
    if f32_math:
        x = x_ref[...].astype(jnp.float32)
        m = jnp.max(x, axis=-1, keepdims=True)
        e = jnp.exp(x - m)
        s = jnp.sum(e, axis=-1, keepdims=True)
    else:
        # bf16 inputs: keep sub/exp in bf16 (bf16-native VPU/EUP on v6e/v7x),
        # accumulate the lane-sum in f32.  Still correct on v5e (compiler
        # upconverts), just not faster there.
        x = x_ref[...]
        m = jnp.max(x, axis=-1, keepdims=True)
        e = jnp.exp(x - m)
        s = jnp.sum(e.astype(jnp.float32), axis=-1, keepdims=True)
    # Exact divide (NOT approx reciprocal): rows must sum to 1 for a "norm";
    # the VALU cost is hidden under the HBM-bound DMA.
    o_ref[...] = (e / s).astype(o_ref.dtype)


def _pick_row_tile(rows, hw, itemsize, sublane, *, per_buffer_cap, live_cap):
    # Live VMEM per element: double-buffered input + output blocks at the
    # input dtype (4*itemsize) plus ~8 B of in-kernel f32 temporaries (x and e
    # are both live across the lane reductions).
    bytes_per_elem = 4 * itemsize + 8
    max_rows = min(per_buffer_cap // max(1, hw * itemsize),
                   live_cap // max(1, hw * bytes_per_elem))
    row_tile = max(sublane, (max_rows // sublane) * sublane)
    row_tile = min(row_tile, _round_up(rows, sublane))
    # Keep >= 8 grid steps when there is enough work: full prefetch/writeback
    # overlap and >= 4 steps per v7x TensorCore on the "parallel" row axis.
    if rows > 8 * sublane:
        row_tile = min(row_tile, _round_up(pl.cdiv(rows, 8), sublane))
    return row_tile


def _softmax_rows_single_pass(x2d, *, row_tile, vmem_limit, donate_input):
    rows, hw = x2d.shape
    dtype = x2d.dtype
    itemsize = jnp.dtype(dtype).itemsize
    f32_math = dtype != jnp.bfloat16
    grid = (pl.cdiv(rows, row_tile),)   # ragged final block is masked by Pallas

    cost = pl.CostEstimate(
        flops=5 * rows * hw,
        transcendentals=rows * hw,
        bytes_accessed=2 * rows * hw * itemsize,
    )
    # TODO(synk): for hw < 128 (or hw not a multiple of 128) a lane-dense
    # restructure (fold rows into the 128-lane axis) would avoid masked
    # vst.msk partial stores; the current layout is still correct.
    # TODO(synk): sweep pipeline_mode=pl.Buffered(3) on the input spec once
    # blocks are in the 1-4 MiB range (small win, be conservative on v7x).
    return pl.pallas_call(
        functools.partial(_softmax_rows_kernel, f32_math=f32_math),
        out_shape=jax.ShapeDtypeStruct((rows, hw), dtype),
        grid_spec=pltpu.PrefetchScalarGridSpec(
            num_scalar_prefetch=0,
            grid=grid,
            in_specs=[pl.BlockSpec((row_tile, hw), lambda i: (i, 0))],
            out_specs=pl.BlockSpec((row_tile, hw), lambda i: (i, 0)),
        ),
        compiler_params=pltpu.CompilerParams(
            dimension_semantics=("parallel",),
            vmem_limit_bytes=vmem_limit,
        ),
        cost_estimate=cost,
        input_output_aliases=({0: 0} if donate_input else {}),
    )(x2d)


# ---------------------------------------------------------------------------
# Two-pass hw-tiled path for very large spatial maps (v7x VMEM ceiling).
# ---------------------------------------------------------------------------
def _softmax_stats_kernel(x_ref, m_ref, l_ref, *, hw: int):
    # Grid: (row blocks ["parallel"], hw blocks ["arbitrary"]).
    # m_ref/l_ref: (row_tile, 1) f32 output blocks, resident across hw steps.
    j = pl.program_id(1)

    @pl.when(j == 0)
    def _():
        m_ref[...] = jnp.full_like(m_ref, -jnp.inf)
        l_ref[...] = jnp.zeros_like(l_ref)

    x = x_ref[...].astype(jnp.float32)
    hw_tile = x.shape[-1]
    lane = lax.broadcasted_iota(jnp.int32, x.shape, 1)
    # Mask lanes past hw in the (possibly ragged) last block so they do not
    # pollute the running max / sum.
    x = jnp.where(j * hw_tile + lane < hw, x, -jnp.inf)

    m_prev = m_ref[...]
    m_new = jnp.maximum(m_prev, jnp.max(x, axis=-1, keepdims=True))
    l_ref[...] = (l_ref[...] * jnp.exp(m_prev - m_new)
                  + jnp.sum(jnp.exp(x - m_new), axis=-1, keepdims=True))
    m_ref[...] = m_new


def _softmax_normalize_kernel(x_ref, m_ref, l_ref, o_ref):
    x = x_ref[...].astype(jnp.float32)
    e = jnp.exp(x - m_ref[...])
    o_ref[...] = (e / l_ref[...]).astype(o_ref.dtype)


def _pick_two_pass_tiles(rows, hw, itemsize, sublane, *, per_buffer_cap, live_cap):
    bytes_per_elem = 4 * itemsize + 8
    row_tile = min(_round_up(rows, sublane), 8 * sublane)
    hw_tile = min(per_buffer_cap // max(1, row_tile * itemsize),
                  live_cap // max(1, row_tile * bytes_per_elem))
    hw_tile = max(128, (hw_tile // 128) * 128)
    hw_tile = min(hw_tile, max(128, (hw // 128) * 128))
    return row_tile, hw_tile


def _softmax_rows_two_pass(x2d, *, row_tile, hw_tile, vmem_limit):
    rows, hw = x2d.shape
    dtype = x2d.dtype
    itemsize = jnp.dtype(dtype).itemsize
    grid = (pl.cdiv(rows, row_tile), pl.cdiv(hw, hw_tile))

    x_spec = pl.BlockSpec((row_tile, hw_tile), lambda i, j: (i, j))
    stat_spec = pl.BlockSpec((row_tile, 1), lambda i, j: (i, 0))

    # Pass 1: per-row running (max, sum-of-exp) over hw tiles.
    m, l = pl.pallas_call(
        functools.partial(_softmax_stats_kernel, hw=hw),
        out_shape=(jax.ShapeDtypeStruct((rows, 1), jnp.float32),
                   jax.ShapeDtypeStruct((rows, 1), jnp.float32)),
        grid_spec=pltpu.PrefetchScalarGridSpec(
            num_scalar_prefetch=0,
            grid=grid,
            in_specs=[x_spec],
            out_specs=(stat_spec, stat_spec),
        ),
        compiler_params=pltpu.CompilerParams(
            dimension_semantics=("parallel", "arbitrary"),
            vmem_limit_bytes=vmem_limit,
        ),
        cost_estimate=pl.CostEstimate(
            flops=3 * rows * hw,
            transcendentals=rows * hw,
            bytes_accessed=rows * hw * itemsize,
        ),
    )(x2d)

    # Pass 2: streaming normalize (pure elementwise, both axes parallel).
    out = pl.pallas_call(
        _softmax_normalize_kernel,
        out_shape=jax.ShapeDtypeStruct((rows, hw), dtype),
        grid_spec=pltpu.PrefetchScalarGridSpec(
            num_scalar_prefetch=0,
            grid=grid,
            in_specs=[x_spec, stat_spec, stat_spec],
            out_specs=pl.BlockSpec((row_tile, hw_tile), lambda i, j: (i, j)),
        ),
        compiler_params=pltpu.CompilerParams(
            dimension_semantics=("parallel", "parallel"),
            vmem_limit_bytes=vmem_limit,
        ),
        cost_estimate=pl.CostEstimate(
            flops=3 * rows * hw,
            transcendentals=rows * hw,
            bytes_accessed=2 * rows * hw * itemsize,
        ),
    )(x2d, m, l)
    return out


# ---------------------------------------------------------------------------
# Public entry point.
# ---------------------------------------------------------------------------
def channel_norm(featmap: jax.Array, *, row_tile: int | None = None,
                 hw_tile: int | None = None, force_two_pass: bool = False,
                 donate_input: bool = False) -> jax.Array:
    """ChannelNorm forward. featmap: (n, c, h, w) -> (n, c, h*w) softmaxed."""
    n, c, h, w = featmap.shape
    hw = h * w
    rows = n * c
    x2d = featmap.reshape(rows, hw)

    itemsize = jnp.dtype(featmap.dtype).itemsize
    # Sub-32-bit dtypes pack along sublanes: 8 rows (f32), 16 (bf16), 32 (8-bit).
    sublane = max(8, 32 // itemsize)

    vmem_limit = _vmem_limit_bytes()
    per_buffer_cap = 2 * _MIB          # mem-bound tiling saturates ~1-2 MiB blocks
    live_cap = vmem_limit // 2         # headroom for compiler scratch / temps
    bytes_per_elem = 4 * itemsize + 8  # db in + db out + f32 temporaries

    # If even a minimal (sublane, hw) block blows the budget, tile hw too.
    single_pass_ok = sublane * hw * bytes_per_elem <= live_cap

    if force_two_pass or not single_pass_ok:
        rt, ht = _pick_two_pass_tiles(rows, hw, itemsize, sublane,
                                      per_buffer_cap=per_buffer_cap,
                                      live_cap=live_cap)
        row_tile = _round_up(max(row_tile or rt, sublane), sublane)
        hw_tile = _round_up(max(hw_tile or ht, 128), 128)
        out2d = _softmax_rows_two_pass(x2d, row_tile=row_tile, hw_tile=hw_tile,
                                       vmem_limit=vmem_limit)
    else:
        if row_tile is None:
            row_tile = _pick_row_tile(rows, hw, itemsize, sublane,
                                      per_buffer_cap=per_buffer_cap,
                                      live_cap=live_cap)
        else:
            row_tile = _round_up(max(row_tile, sublane), sublane)
        out2d = _softmax_rows_single_pass(x2d, row_tile=row_tile,
                                          vmem_limit=vmem_limit,
                                          donate_input=donate_input)

    return out2d.reshape(n, c, hw)


if __name__ == "__main__":
    key = jax.random.PRNGKey(0)
    n, c, h, w = 2, 4, 16, 16
    x = jax.random.normal(key, (n, c, h, w), dtype=jnp.float32)

    # Main path (single-pass, f32).
    out = jax.block_until_ready(channel_norm(x))
    ref = jax.nn.softmax(x.reshape(n, c, h * w), axis=-1)
    assert out.shape == (n, c, h * w)
    assert jnp.allclose(out, ref, atol=1e-5, rtol=1e-5)
    assert jnp.allclose(jnp.sum(out, axis=-1), 1.0, atol=1e-5)

    # Exercise the hw-tiled two-pass path used for very large spatial maps.
    out_tiled = jax.block_until_ready(
        channel_norm(x, hw_tile=128, force_two_pass=True))
    assert jnp.allclose(out_tiled, ref, atol=1e-5, rtol=1e-5)

    # Exercise the low-precision (bf16) math path used on v6e/v7x.
    x_bf16 = x.astype(jnp.bfloat16)
    out_bf16 = jax.block_until_ready(channel_norm(x_bf16))
    ref_bf16 = jax.nn.softmax(
        x_bf16.astype(jnp.float32).reshape(n, c, h * w), axis=-1)
    assert jnp.allclose(out_bf16.astype(jnp.float32), ref_bf16,
                        atol=5e-3, rtol=5e-2)
    assert jnp.allclose(jnp.sum(out_bf16.astype(jnp.float32), axis=-1), 1.0,
                        atol=5e-2)

    print("KERNEL_OK")
</pallas_src>

<mosaic_0001>
module attributes {stable_mosaic.version = 11 : i64} {
  func.func @_softmax_rows_kernel(%arg0: i32, %arg1: memref<8x256xf32, #tpu.memory_space<vmem>>, %arg2: memref<8x256xf32, #tpu.memory_space<vmem>>) attributes {dimension_semantics = [#tpu.dimension_semantics<parallel>], iteration_bounds = array<i64: 1>, scalar_prefetch = 0 : i64, scratch_operands = 0 : i64, tpu.core_type = #tpu.core_type<tc>, window_params = [{transform_indices = @transform_0, window_bounds = array<i64: 8, 256>}, {transform_indices = @transform_1, window_bounds = array<i64: 8, 256>}]} {
    %c0 = arith.constant 0 : index
    %c0_0 = arith.constant 0 : index
    %0 = vector.load %arg1[%c0, %c0_0] : memref<8x256xf32, #tpu.memory_space<vmem>>, vector<8x256xf32>
    %cst = arith.constant dense<0xFF800000> : vector<8xf32>
    %1 = vector.multi_reduction <maximumf>, %0, %cst [1] : vector<8x256xf32> to vector<8xf32>
    %2 = vector.shape_cast %1 : vector<8xf32> to vector<8x1xf32>
    %3 = vector.broadcast %2 : vector<8x1xf32> to vector<8x256xf32>
    %4 = arith.subf %0, %3 : vector<8x256xf32>
    %5 = math.exp %4 : vector<8x256xf32>
    %cst_1 = arith.constant dense<0.000000e+00> : vector<8xf32>
    %6 = vector.multi_reduction <add>, %5, %cst_1 [1] : vector<8x256xf32> to vector<8xf32>
    %7 = vector.shape_cast %6 : vector<8xf32> to vector<8x1xf32>
    %8 = vector.broadcast %7 : vector<8x1xf32> to vector<8x256xf32>
    %9 = arith.divf %5, %8 : vector<8x256xf32>
    %c0_2 = arith.constant 0 : index
    %c0_3 = arith.constant 0 : index
    %10 = vector.load %arg2[%c0_2, %c0_3] : memref<8x256xf32, #tpu.memory_space<vmem>>, vector<8x256xf32>
    tpu.vector_store %arg2[%c0_2, %c0_3], %9 {strides = array<i32>} : memref<8x256xf32, #tpu.memory_space<vmem>>, vector<8x256xf32>,
    return
  }
  func.func @transform_0(%arg0: i32) -> (i32, i32) {
    %c0_i32 = arith.constant 0 : i32
    %c0_i32_0 = arith.constant 0 : i32
    return %arg0, %c0_i32 : i32, i32
  }
  func.func @transform_1(%arg0: i32) -> (i32, i32) {
    %c0_i32 = arith.constant 0 : i32
    %c0_i32_0 = arith.constant 0 : i32
    return %arg0, %c0_i32 : i32, i32
  }
}

</mosaic_0001>

<llo_original>
// kernel: tpu_custom_call.1
$region0: #{tpu_custom_call.1}
  #allocation0 [shape = 'u32[]', space=smem, size = 0x4, offset = 0x4, fixed_abs, tag = 'smem constant byte address 0x4 - core index']
  #allocation1 [shape = 'u32[144,128]{1,0:T(1,128)}', space=vmem, size = 0x12000, scoped, tag = 'internal scratch']
  %s0 = inlined_call_operand.hbm [shape: f32[8,256], index: 0, kind: input, shape index: {}]
  %s1 = inlined_call_operand.hbm [shape: f32[8,256], index: 1, kind: output, shape index: {}]
  %s2 = sld [smem:[#allocation0]]
  $region18: #{tpu_custom_call.1} parent=0
    _
  %s4 = ssub.s32 1, %s2
  %s5 = scalar_select 0, %s4, %s2
  $region1: #{tpu_custom_call.1} parent=0
    #allocation2 [shape = 'u8[8192]{0}', space=vmem, size = 0x2000, scoped, tag = 'input window, operand 0, single buffered']
    #allocation3 [shape = 's32[1]{0}', space=sflag, size = 0x4, scoped, tag = 'scoped memory for tpu_custom_call.1']
    #allocation4 [shape = 's32[1]{0}', space=sflag, size = 0x4, scoped, tag = 'scoped memory for tpu_custom_call.1']
    #allocation5 [shape = 'u8[8192]{0}', space=vmem, size = 0x2000, scoped, tag = 'output window, operand 0, single buffered']
    %6 = vsyncpa [#allocation3], 0
    %7 = vsyncpa [#allocation4], 0
    // Predicated region
    $region2: #{tpu_custom_call.1} parent=1 // pred_check
      _
    $region3: #{tpu_custom_call.1} parent=1 // pred_check_branch
      %9 = sbr.rel (0) target = $region5
    $region4: #{tpu_custom_call.1} parent=1 // pred_region
      %s11 = ssub.s32 256, 256
      %12 = vsyncadd [#allocation3], %s11
      %s14 = sshll.u32 [#allocation2], 4
      %s15 = int_to_ptr.vmem [resolvable:$true] %s14
      %17 = dma.hbm_to_vmem [thread:$0]  %s0, 256, %s15, [#allocation3]
    $region5: #{tpu_custom_call.1} parent=1 // pred_fallthru
      _
    // Predicated region
    $region6: #{tpu_custom_call.1} parent=1 // pred_check
      _
    $region7: #{tpu_custom_call.1} parent=1 // pred_check_branch
      %19 = sbr.rel (0) target = $region9
    $region8: #{tpu_custom_call.1} parent=1 // pred_region
      %20 = dma.done [#allocation3], 256
    $region9: #{tpu_custom_call.1} parent=1 // pred_fallthru
      _
    %v21 = vld [vmem:[#allocation2] sm:$0xff]
    %v22 = vld [vmem:[#allocation2 + $0x8] sm:$0xff]
    %v23 = vmax.f32 %v21, %v22
    %24 = vmax.xlane.f32.xlu0 %v23
    %v25 = vpop.xlane.xlu0 %24
    %v26 = vsub.f32 %v21, %v25
    %v27 = vsub.f32 %v22, %v25
    %v28 = vmul.f32 %v26, 1.442695
    %v29 = vpow.pop %v28
    %v30 = vmul.f32 %v27, 1.442695
    %v31 = vpow.pop %v30
    %v32 = vadd.f32 %v29, %v31
    %33 = vadd.xlane.f32.xlu0 %v32
    %v34 = vpop.xlane.xlu0 %33
    %v35 = vrcp.pop %v34
    %v36 = vmul.f32 %v29, %v35
    %v37 = vmul.f32 %v31, %v35
    %38 = vst [vmem:[#allocation5] sm:$0xff] %v36
    %39 = vst [vmem:[#allocation5 + $0x8] sm:$0xff] %v37
    // Predicated region
    $region10: #{tpu_custom_call.1} parent=1 // pred_check
      _
    $region11: #{tpu_custom_call.1} parent=1 // pred_check_branch
      %41 = sbr.rel (0) target = $region13
    $region12: #{tpu_custom_call.1} parent=1 // pred_region
      %s43 = ssub.s32 256, 256
      %44 = vsyncadd [#allocation4], %s43
      %s46 = sshll.u32 [#allocation5], 4
      %s47 = int_to_ptr.vmem [resolvable:$true] %s46
      %49 = dma.vmem_to_hbm [thread:$0]  %s47, 256, %s1, [#allocation4]
    $region13: #{tpu_custom_call.1} parent=1 // pred_fallthru
      _
    // Predicated region
    $region14: #{tpu_custom_call.1} parent=1 // pred_check
      _
    $region15: #{tpu_custom_call.1} parent=1 // pred_check_branch
      %51 = sbr.rel (0) target = $region17
    $region16: #{tpu_custom_call.1} parent=1 // pred_region
      %52 = dma.done [#allocation4], 256
    $region17: #{tpu_custom_call.1} parent=1 // pred_fallthru
      _
    %53 = vsyncpa [#allocation3], 1
    %54 = vsyncpa [#allocation4], 1

</llo_original>
